<compile_context>
chip_gen: v5e
topology: v5e:2x2
jax: 0.10.0
libtpu: 0.0.40
codegen_flags: <defaults>
</compile_context>

<pallas_src>
import functools

import jax
import jax.numpy as jnp
from jax.experimental import pallas as pl
from jax.experimental.pallas import tpu as pltpu


def _round_up(x, m):
    return ((x + m - 1) // m) * m


def conv2d_pallas(x_nchw, w_packed, b_packed, *, KH, KW, OC):
    """VALID (padding=0, stride=1) conv2d over NCHW input.

    w_packed: (OC_pad, KH*KW*C_pad), column index k*C_pad + c with k = kh*KW+kw.
    b_packed: (OC_pad, 1).
    """
    N, C, H, W = x_nchw.shape
    OH = H - KH + 1
    OW = W - KW + 1
    HW = H * W

    C_pad = _round_up(C, 8)        # in-channels on sublanes
    OC_pad = _round_up(OC, 8)      # out-channels on sublanes (lane-dense output)
    K_dim = KH * KW * C_pad        # fused im2col contraction depth
    assert w_packed.shape == (OC_pad, K_dim), w_packed.shape
    assert b_packed.shape == (OC_pad, 1), b_packed.shape

    HW_out = _round_up(HW, 128)    # flattened (h*W + w) on lanes
    max_off = (KH - 1) * W + (KW - 1)
    HW_in = _round_up(HW + max_off, 128)
    # Roll-then-slice correctness: shifted reads of the last kept output lane
    # must not wrap around the padded image buffer.
    assert HW_in >= HW + max_off, (HW_in, HW, max_off)
    assert HW_out <= HW_in

    # Only glue: a free reshape merging H,W.  No per-call padding of x.
    x_flat = x_nchw.astype(jnp.float32).reshape(N, C, HW)

    def kernel(x_ref, w_ref, b_ref, o_ref, xpad_ref, col_ref):
        # x_ref   : (N, C, HW)          raw (unpadded) images
        # w_ref   : (OC_pad, K_dim)     fused per-tap weights
        # b_ref   : (OC_pad, 1)
        # o_ref   : (N, OC_pad, HW_out) NCHW-ordered over the full HxW grid
        # xpad_ref: VMEM (C_pad, HW_in) zero-padded image (in-kernel pad)
        # col_ref : VMEM (K_dim, HW_out) im2col operand for one image
        #
        # Zero the padded tile once; channel-pad rows (C..C_pad) and lane
        # slack (HW..HW_in) stay zero for every image.
        xpad_ref[...] = jnp.zeros_like(xpad_ref)
        for n in range(N):                      # whole (small) batch, one grid step
            xpad_ref[:C, :HW] = x_ref[n]
            x = xpad_ref[...]                   # (C_pad, HW_in)
            for kh in range(KH):
                for kw in range(KW):
                    off = kh * W + kw
                    k = kh * KW + kw
                    # Bring input position (m + off) to lane m: cheap XLU
                    # rotation + aligned [:, :HW_out] slice.  Garbage only
                    # lands at cropped output positions (h >= OH or w >= OW).
                    shifted = x if off == 0 else pltpu.roll(x, HW_in - off, axis=1)
                    col_ref[k * C_pad:(k + 1) * C_pad, :] = shifted[:, :HW_out]
            # Single fused MXU matmul (K = KH*KW*C_pad) instead of 9 small dots.
            acc = jnp.dot(w_ref[...], col_ref[...],
                          preferred_element_type=jnp.float32)
            o_ref[n] = acc + b_ref[...]         # bias broadcast over lanes

    out = pl.pallas_call(
        kernel,
        out_shape=jax.ShapeDtypeStruct((N, OC_pad, HW_out), jnp.float32),
        grid=(1,),
        in_specs=[
            pl.BlockSpec((N, C, HW), lambda i: (0, 0, 0)),
            pl.BlockSpec((OC_pad, K_dim), lambda i: (0, 0)),
            pl.BlockSpec((OC_pad, 1), lambda i: (0, 0)),
        ],
        out_specs=pl.BlockSpec((N, OC_pad, HW_out), lambda i: (0, 0, 0)),
        scratch_shapes=[
            pltpu.VMEM((C_pad, HW_in), jnp.float32),
            pltpu.VMEM((K_dim, HW_out), jnp.float32),
        ],
        compiler_params=pltpu.CompilerParams(
            dimension_semantics=("arbitrary",)),
    )(x_flat, w_packed, b_packed)

    # (N, OC_pad, HW_out) is already NCHW-ordered: crop padded channels and
    # flat-spatial slack, reshape, crop to valid conv outputs.  No transpose.
    out = out[:, :OC, :HW].reshape(N, OC, H, W)
    return out[:, :, :OH, :OW]


class TestNNPallas:
    """Mirror of the PyTorch TestNN module: conv1 = Conv2d(3, 6, 3, stride=1, padding=0)."""

    def __init__(self, key):
        kw_, kb_ = jax.random.split(key)
        OC, IC, KH, KW = 6, 3, 3, 3
        fan_in = IC * KH * KW
        bound = 1.0 / (fan_in ** 0.5)
        # Deterministic, torch-like uniform(-bound, bound) init.
        self.weight = jax.random.uniform(
            kw_, (OC, IC, KH, KW), jnp.float32, minval=-bound, maxval=bound)
        self.bias = jax.random.uniform(
            kb_, (OC,), jnp.float32, minval=-bound, maxval=bound)

        # One-time weight/bias packing, hoisted out of the per-call path:
        # (OC, IC, KH, KW) -> (OC_pad, KH*KW*C_pad), column index k*C_pad + c.
        C_pad = _round_up(IC, 8)
        OC_pad = _round_up(OC, 8)
        w_p = jnp.transpose(self.weight, (0, 2, 3, 1)).reshape(OC, KH * KW, IC)
        w_p = jnp.pad(w_p, ((0, OC_pad - OC), (0, 0), (0, C_pad - IC)))
        self.w_packed = w_p.reshape(OC_pad, KH * KW * C_pad)
        self.b_packed = jnp.pad(self.bias.reshape(OC, 1),
                                ((0, OC_pad - OC), (0, 0)))

        self._fwd = jax.jit(
            functools.partial(conv2d_pallas, KH=KH, KW=KW, OC=OC))

    def __call__(self, x):
        return self._fwd(x, self.w_packed, self.b_packed)


if __name__ == "__main__":
    key = jax.random.PRNGKey(0)
    k_params, k_x = jax.random.split(key)

    model = TestNNPallas(k_params)
    x = jax.random.normal(k_x, (2, 3, 16, 16), jnp.float32)  # NCHW, like torch

    y = jax.block_until_ready(model(x))
    assert y.shape == (2, 6, 14, 14), y.shape

    # Sanity check against XLA's conv as the reference implementation.
    ref = jax.lax.conv_general_dilated(
        x, model.weight, window_strides=(1, 1), padding="VALID",
        dimension_numbers=("NCHW", "OIHW", "NCHW"),
    ) + model.bias[None, :, None, None]
    assert jnp.allclose(y, ref, atol=1e-4, rtol=1e-4), float(
        jnp.max(jnp.abs(y - ref)))

    print("KERNEL_OK")
</pallas_src>

<mosaic_0001>
module attributes {stable_mosaic.version = 11 : i64} {
  func.func @kernel(%arg0: i32, %arg1: memref<2x3x256xf32, #tpu.memory_space<vmem>>, %arg2: memref<8x72xf32, #tpu.memory_space<vmem>>, %arg3: memref<8x1xf32, #tpu.memory_space<vmem>>, %arg4: memref<2x8x256xf32, #tpu.memory_space<vmem>>, %arg5: memref<8x384xf32, #tpu.memory_space<vmem>>, %arg6: memref<72x256xf32, #tpu.memory_space<vmem>>) attributes {dimension_semantics = [#tpu.dimension_semantics<arbitrary>], iteration_bounds = array<i64: 1>, scalar_prefetch = 0 : i64, scratch_operands = 2 : i64, tpu.core_type = #tpu.core_type<tc>, window_params = [{pipeline_mode = #tpu.pipeline_mode<synchronous>, transform_indices = @transform_0, window_bounds = array<i64: 2, 3, 256>}, {pipeline_mode = #tpu.pipeline_mode<synchronous>, transform_indices = @transform_1, window_bounds = array<i64: 8, 72>}, {pipeline_mode = #tpu.pipeline_mode<synchronous>, transform_indices = @transform_2, window_bounds = array<i64: 8, 1>}, {pipeline_mode = #tpu.pipeline_mode<synchronous>, transform_indices = @transform_3, window_bounds = array<i64: 2, 8, 256>}]} {
    %cst = arith.constant 0.000000e+00 : f32
    %0 = vector.broadcast %cst : f32 to vector<8x384xf32>
    %c0 = arith.constant 0 : index
    %c0_0 = arith.constant 0 : index
    %1 = vector.load %arg5[%c0, %c0_0] : memref<8x384xf32, #tpu.memory_space<vmem>>, vector<8x384xf32>
    tpu.vector_store %arg5[%c0, %c0_0], %0 {strides = array<i32>} : memref<8x384xf32, #tpu.memory_space<vmem>>, vector<8x384xf32>,
    %c0_1 = arith.constant 0 : index
    %c0_2 = arith.constant 0 : index
    %c0_3 = arith.constant 0 : index
    %2 = vector.load %arg1[%c0_1, %c0_2, %c0_3] : memref<2x3x256xf32, #tpu.memory_space<vmem>>, vector<1x3x256xf32>
    %3 = vector.shape_cast %2 : vector<1x3x256xf32> to vector<3x256xf32>
    %c0_4 = arith.constant 0 : index
    %c0_5 = arith.constant 0 : index
    %4 = vector.load %arg5[%c0_4, %c0_5] : memref<8x384xf32, #tpu.memory_space<vmem>>, vector<3x256xf32>
    tpu.vector_store %arg5[%c0_4, %c0_5], %3 {strides = array<i32>} : memref<8x384xf32, #tpu.memory_space<vmem>>, vector<3x256xf32>,
    %c0_6 = arith.constant 0 : index
    %c0_7 = arith.constant 0 : index
    %5 = vector.load %arg5[%c0_6, %c0_7] : memref<8x384xf32, #tpu.memory_space<vmem>>, vector<8x384xf32>
    %6 = vector.extract_strided_slice %5 {offsets = [0, 0], sizes = [8, 256], strides = [1, 1]} : vector<8x384xf32> to vector<8x256xf32>
    %c0_8 = arith.constant 0 : index
    %c0_9 = arith.constant 0 : index
    %7 = vector.load %arg6[%c0_8, %c0_9] : memref<72x256xf32, #tpu.memory_space<vmem>>, vector<8x256xf32>
    tpu.vector_store %arg6[%c0_8, %c0_9], %6 {strides = array<i32>} : memref<72x256xf32, #tpu.memory_space<vmem>>, vector<8x256xf32>,
    %c383_i32 = arith.constant 383 : i32
    %8 = tpu.dynamic_rotate %5 by %c383_i32 dim 1 : vector<8x384xf32>, i32 -> vector<8x384xf32>
    %9 = vector.extract_strided_slice %8 {offsets = [0, 0], sizes = [8, 256], strides = [1, 1]} : vector<8x384xf32> to vector<8x256xf32>
    %c8 = arith.constant 8 : index
    %c0_10 = arith.constant 0 : index
    %10 = vector.load %arg6[%c8, %c0_10] : memref<72x256xf32, #tpu.memory_space<vmem>>, vector<8x256xf32>
    tpu.vector_store %arg6[%c8, %c0_10], %9 {strides = array<i32>} : memref<72x256xf32, #tpu.memory_space<vmem>>, vector<8x256xf32>,
    %c382_i32 = arith.constant 382 : i32
    %11 = tpu.dynamic_rotate %5 by %c382_i32 dim 1 : vector<8x384xf32>, i32 -> vector<8x384xf32>
    %12 = vector.extract_strided_slice %11 {offsets = [0, 0], sizes = [8, 256], strides = [1, 1]} : vector<8x384xf32> to vector<8x256xf32>
    %c16 = arith.constant 16 : index
    %c0_11 = arith.constant 0 : index
    %13 = vector.load %arg6[%c16, %c0_11] : memref<72x256xf32, #tpu.memory_space<vmem>>, vector<8x256xf32>
    tpu.vector_store %arg6[%c16, %c0_11], %12 {strides = array<i32>} : memref<72x256xf32, #tpu.memory_space<vmem>>, vector<8x256xf32>,
    %c368_i32 = arith.constant 368 : i32
    %14 = tpu.dynamic_rotate %5 by %c368_i32 dim 1 : vector<8x384xf32>, i32 -> vector<8x384xf32>
    %15 = vector.extract_strided_slice %14 {offsets = [0, 0], sizes = [8, 256], strides = [1, 1]} : vector<8x384xf32> to vector<8x256xf32>
    %c24 = arith.constant 24 : index
    %c0_12 = arith.constant 0 : index
    %16 = vector.load %arg6[%c24, %c0_12] : memref<72x256xf32, #tpu.memory_space<vmem>>, vector<8x256xf32>
    tpu.vector_store %arg6[%c24, %c0_12], %15 {strides = array<i32>} : memref<72x256xf32, #tpu.memory_space<vmem>>, vector<8x256xf32>,
    %c367_i32 = arith.constant 367 : i32
    %17 = tpu.dynamic_rotate %5 by %c367_i32 dim 1 : vector<8x384xf32>, i32 -> vector<8x384xf32>
    %18 = vector.extract_strided_slice %17 {offsets = [0, 0], sizes = [8, 256], strides = [1, 1]} : vector<8x384xf32> to vector<8x256xf32>
    %c32 = arith.constant 32 : index
    %c0_13 = arith.constant 0 : index
    %19 = vector.load %arg6[%c32, %c0_13] : memref<72x256xf32, #tpu.memory_space<vmem>>, vector<8x256xf32>
    tpu.vector_store %arg6[%c32, %c0_13], %18 {strides = array<i32>} : memref<72x256xf32, #tpu.memory_space<vmem>>, vector<8x256xf32>,
    %c366_i32 = arith.constant 366 : i32
    %20 = tpu.dynamic_rotate %5 by %c366_i32 dim 1 : vector<8x384xf32>, i32 -> vector<8x384xf32>
    %21 = vector.extract_strided_slice %20 {offsets = [0, 0], sizes = [8, 256], strides = [1, 1]} : vector<8x384xf32> to vector<8x256xf32>
    %c40 = arith.constant 40 : index
    %c0_14 = arith.constant 0 : index
    %22 = vector.load %arg6[%c40, %c0_14] : memref<72x256xf32, #tpu.memory_space<vmem>>, vector<8x256xf32>
    tpu.vector_store %arg6[%c40, %c0_14], %21 {strides = array<i32>} : memref<72x256xf32, #tpu.memory_space<vmem>>, vector<8x256xf32>,
    %c352_i32 = arith.constant 352 : i32
    %23 = tpu.dynamic_rotate %5 by %c352_i32 dim 1 : vector<8x384xf32>, i32 -> vector<8x384xf32>
    %24 = vector.extract_strided_slice %23 {offsets = [0, 0], sizes = [8, 256], strides = [1, 1]} : vector<8x384xf32> to vector<8x256xf32>
    %c48 = arith.constant 48 : index
    %c0_15 = arith.constant 0 : index
    %25 = vector.load %arg6[%c48, %c0_15] : memref<72x256xf32, #tpu.memory_space<vmem>>, vector<8x256xf32>
    tpu.vector_store %arg6[%c48, %c0_15], %24 {strides = array<i32>} : memref<72x256xf32, #tpu.memory_space<vmem>>, vector<8x256xf32>,
    %c351_i32 = arith.constant 351 : i32
    %26 = tpu.dynamic_rotate %5 by %c351_i32 dim 1 : vector<8x384xf32>, i32 -> vector<8x384xf32>
    %27 = vector.extract_strided_slice %26 {offsets = [0, 0], sizes = [8, 256], strides = [1, 1]} : vector<8x384xf32> to vector<8x256xf32>
    %c56 = arith.constant 56 : index
    %c0_16 = arith.constant 0 : index
    %28 = vector.load %arg6[%c56, %c0_16] : memref<72x256xf32, #tpu.memory_space<vmem>>, vector<8x256xf32>
    tpu.vector_store %arg6[%c56, %c0_16], %27 {strides = array<i32>} : memref<72x256xf32, #tpu.memory_space<vmem>>, vector<8x256xf32>,
    %c350_i32 = arith.constant 350 : i32
    %29 = tpu.dynamic_rotate %5 by %c350_i32 dim 1 : vector<8x384xf32>, i32 -> vector<8x384xf32>
    %30 = vector.extract_strided_slice %29 {offsets = [0, 0], sizes = [8, 256], strides = [1, 1]} : vector<8x384xf32> to vector<8x256xf32>
    %c64 = arith.constant 64 : index
    %c0_17 = arith.constant 0 : index
    %31 = vector.load %arg6[%c64, %c0_17] : memref<72x256xf32, #tpu.memory_space<vmem>>, vector<8x256xf32>
    tpu.vector_store %arg6[%c64, %c0_17], %30 {strides = array<i32>} : memref<72x256xf32, #tpu.memory_space<vmem>>, vector<8x256xf32>,
    %c0_18 = arith.constant 0 : index
    %c0_19 = arith.constant 0 : index
    %32 = vector.load %arg2[%c0_18, %c0_19] : memref<8x72xf32, #tpu.memory_space<vmem>>, vector<8x72xf32>
    %c0_20 = arith.constant 0 : index
    %c0_21 = arith.constant 0 : index
    %33 = vector.load %arg6[%c0_20, %c0_21] : memref<72x256xf32, #tpu.memory_space<vmem>>, vector<72x256xf32>
    %cst_22 = arith.constant dense<0.000000e+00> : vector<8x256xf32>
    %34 = tpu.matmul %32, %33, %cst_22 {dimension_numbers = #tpu.dot_dimension_numbers<[1], [0], [0], [1], [0, 0, 1, 1], [], []>} : vector<8x72xf32>, vector<72x256xf32>, vector<8x256xf32> -> vector<8x256xf32>
    %c0_23 = arith.constant 0 : index
    %c0_24 = arith.constant 0 : index
    %35 = vector.load %arg3[%c0_23, %c0_24] : memref<8x1xf32, #tpu.memory_space<vmem>>, vector<8x1xf32>
    %36 = vector.broadcast %35 : vector<8x1xf32> to vector<8x256xf32>
    %37 = arith.addf %34, %36 : vector<8x256xf32>
    %c0_25 = arith.constant 0 : index
    %c0_26 = arith.constant 0 : index
    %c0_27 = arith.constant 0 : index
    %38 = vector.load %arg4[%c0_25, %c0_26, %c0_27] : memref<2x8x256xf32, #tpu.memory_space<vmem>>, vector<1x8x256xf32>
    %39 = vector.shape_cast %38 : vector<1x8x256xf32> to vector<8x256xf32>
    %40 = vector.shape_cast %37 : vector<8x256xf32> to vector<1x8x256xf32>
    tpu.vector_store %arg4[%c0_25, %c0_26, %c0_27], %40 {strides = array<i32>} : memref<2x8x256xf32, #tpu.memory_space<vmem>>, vector<1x8x256xf32>,
    %c1 = arith.constant 1 : index
    %c0_28 = arith.constant 0 : index
    %c0_29 = arith.constant 0 : index
    %41 = vector.load %arg1[%c1, %c0_28, %c0_29] : memref<2x3x256xf32, #tpu.memory_space<vmem>>, vector<1x3x256xf32>
    %42 = vector.shape_cast %41 : vector<1x3x256xf32> to vector<3x256xf32>
    %c0_30 = arith.constant 0 : index
    %c0_31 = arith.constant 0 : index
    %43 = vector.load %arg5[%c0_30, %c0_31] : memref<8x384xf32, #tpu.memory_space<vmem>>, vector<3x256xf32>
    tpu.vector_store %arg5[%c0_30, %c0_31], %42 {strides = array<i32>} : memref<8x384xf32, #tpu.memory_space<vmem>>, vector<3x256xf32>,
    %c0_32 = arith.constant 0 : index
    %c0_33 = arith.constant 0 : index
    %44 = vector.load %arg5[%c0_32, %c0_33] : memref<8x384xf32, #tpu.memory_space<vmem>>, vector<8x384xf32>
    %45 = vector.extract_strided_slice %44 {offsets = [0, 0], sizes = [8, 256], strides = [1, 1]} : vector<8x384xf32> to vector<8x256xf32>
    %c0_34 = arith.constant 0 : index
    %c0_35 = arith.constant 0 : index
    %46 = vector.load %arg6[%c0_34, %c0_35] : memref<72x256xf32, #tpu.memory_space<vmem>>, vector<8x256xf32>
    tpu.vector_store %arg6[%c0_34, %c0_35], %45 {strides = array<i32>} : memref<72x256xf32, #tpu.memory_space<vmem>>, vector<8x256xf32>,
    %c383_i32_36 = arith.constant 383 : i32
    %47 = tpu.dynamic_rotate %44 by %c383_i32_36 dim 1 : vector<8x384xf32>, i32 -> vector<8x384xf32>
    %48 = vector.extract_strided_slice %47 {offsets = [0, 0], sizes = [8, 256], strides = [1, 1]} : vector<8x384xf32> to vector<8x256xf32>
    %c8_37 = arith.constant 8 : index
    %c0_38 = arith.constant 0 : index
    %49 = vector.load %arg6[%c8_37, %c0_38] : memref<72x256xf32, #tpu.memory_space<vmem>>, vector<8x256xf32>
    tpu.vector_store %arg6[%c8_37, %c0_38], %48 {strides = array<i32>} : memref<72x256xf32, #tpu.memory_space<vmem>>, vector<8x256xf32>,
    %c382_i32_39 = arith.constant 382 : i32
    %50 = tpu.dynamic_rotate %44 by %c382_i32_39 dim 1 : vector<8x384xf32>, i32 -> vector<8x384xf32>
    %51 = vector.extract_strided_slice %50 {offsets = [0, 0], sizes = [8, 256], strides = [1, 1]} : vector<8x384xf32> to vector<8x256xf32>
    %c16_40 = arith.constant 16 : index
    %c0_41 = arith.constant 0 : index
    %52 = vector.load %arg6[%c16_40, %c0_41] : memref<72x256xf32, #tpu.memory_space<vmem>>, vector<8x256xf32>
    tpu.vector_store %arg6[%c16_40, %c0_41], %51 {strides = array<i32>} : memref<72x256xf32, #tpu.memory_space<vmem>>, vector<8x256xf32>,
    %c368_i32_42 = arith.constant 368 : i32
    %53 = tpu.dynamic_rotate %44 by %c368_i32_42 dim 1 : vector<8x384xf32>, i32 -> vector<8x384xf32>
    %54 = vector.extract_strided_slice %53 {offsets = [0, 0], sizes = [8, 256], strides = [1, 1]} : vector<8x384xf32> to vector<8x256xf32>
    %c24_43 = arith.constant 24 : index
    %c0_44 = arith.constant 0 : index
    %55 = vector.load %arg6[%c24_43, %c0_44] : memref<72x256xf32, #tpu.memory_space<vmem>>, vector<8x256xf32>
    tpu.vector_store %arg6[%c24_43, %c0_44], %54 {strides = array<i32>} : memref<72x256xf32, #tpu.memory_space<vmem>>, vector<8x256xf32>,
    %c367_i32_45 = arith.constant 367 : i32
    %56 = tpu.dynamic_rotate %44 by %c367_i32_45 dim 1 : vector<8x384xf32>, i32 -> vector<8x384xf32>
    %57 = vector.extract_strided_slice %56 {offsets = [0, 0], sizes = [8, 256], strides = [1, 1]} : vector<8x384xf32> to vector<8x256xf32>
    %c32_46 = arith.constant 32 : index
    %c0_47 = arith.constant 0 : index
    %58 = vector.load %arg6[%c32_46, %c0_47] : memref<72x256xf32, #tpu.memory_space<vmem>>, vector<8x256xf32>
    tpu.vector_store %arg6[%c32_46, %c0_47], %57 {strides = array<i32>} : memref<72x256xf32, #tpu.memory_space<vmem>>, vector<8x256xf32>,
    %c366_i32_48 = arith.constant 366 : i32
    %59 = tpu.dynamic_rotate %44 by %c366_i32_48 dim 1 : vector<8x384xf32>, i32 -> vector<8x384xf32>
    %60 = vector.extract_strided_slice %59 {offsets = [0, 0], sizes = [8, 256], strides = [1, 1]} : vector<8x384xf32> to vector<8x256xf32>
    %c40_49 = arith.constant 40 : index
    %c0_50 = arith.constant 0 : index
    %61 = vector.load %arg6[%c40_49, %c0_50] : memref<72x256xf32, #tpu.memory_space<vmem>>, vector<8x256xf32>
    tpu.vector_store %arg6[%c40_49, %c0_50], %60 {strides = array<i32>} : memref<72x256xf32, #tpu.memory_space<vmem>>, vector<8x256xf32>,
    %c352_i32_51 = arith.constant 352 : i32
    %62 = tpu.dynamic_rotate %44 by %c352_i32_51 dim 1 : vector<8x384xf32>, i32 -> vector<8x384xf32>
    %63 = vector.extract_strided_slice %62 {offsets = [0, 0], sizes = [8, 256], strides = [1, 1]} : vector<8x384xf32> to vector<8x256xf32>
    %c48_52 = arith.constant 48 : index
    %c0_53 = arith.constant 0 : index
    %64 = vector.load %arg6[%c48_52, %c0_53] : memref<72x256xf32, #tpu.memory_space<vmem>>, vector<8x256xf32>
    tpu.vector_store %arg6[%c48_52, %c0_53], %63 {strides = array<i32>} : memref<72x256xf32, #tpu.memory_space<vmem>>, vector<8x256xf32>,
    %c351_i32_54 = arith.constant 351 : i32
    %65 = tpu.dynamic_rotate %44 by %c351_i32_54 dim 1 : vector<8x384xf32>, i32 -> vector<8x384xf32>
    %66 = vector.extract_strided_slice %65 {offsets = [0, 0], sizes = [8, 256], strides = [1, 1]} : vector<8x384xf32> to vector<8x256xf32>
    %c56_55 = arith.constant 56 : index
    %c0_56 = arith.constant 0 : index
    %67 = vector.load %arg6[%c56_55, %c0_56] : memref<72x256xf32, #tpu.memory_space<vmem>>, vector<8x256xf32>
    tpu.vector_store %arg6[%c56_55, %c0_56], %66 {strides = array<i32>} : memref<72x256xf32, #tpu.memory_space<vmem>>, vector<8x256xf32>,
    %c350_i32_57 = arith.constant 350 : i32
    %68 = tpu.dynamic_rotate %44 by %c350_i32_57 dim 1 : vector<8x384xf32>, i32 -> vector<8x384xf32>
    %69 = vector.extract_strided_slice %68 {offsets = [0, 0], sizes = [8, 256], strides = [1, 1]} : vector<8x384xf32> to vector<8x256xf32>
    %c64_58 = arith.constant 64 : index
    %c0_59 = arith.constant 0 : index
    %70 = vector.load %arg6[%c64_58, %c0_59] : memref<72x256xf32, #tpu.memory_space<vmem>>, vector<8x256xf32>
    tpu.vector_store %arg6[%c64_58, %c0_59], %69 {strides = array<i32>} : memref<72x256xf32, #tpu.memory_space<vmem>>, vector<8x256xf32>,
    %c0_60 = arith.constant 0 : index
    %c0_61 = arith.constant 0 : index
    %71 = vector.load %arg2[%c0_60, %c0_61] : memref<8x72xf32, #tpu.memory_space<vmem>>, vector<8x72xf32>
    %c0_62 = arith.constant 0 : index
    %c0_63 = arith.constant 0 : index
    %72 = vector.load %arg6[%c0_62, %c0_63] : memref<72x256xf32, #tpu.memory_space<vmem>>, vector<72x256xf32>
    %cst_64 = arith.constant dense<0.000000e+00> : vector<8x256xf32>
    %73 = tpu.matmul %71, %72, %cst_64 {dimension_numbers = #tpu.dot_dimension_numbers<[1], [0], [0], [1], [0, 0, 1, 1], [], []>} : vector<8x72xf32>, vector<72x256xf32>, vector<8x256xf32> -> vector<8x256xf32>
    %c0_65 = arith.constant 0 : index
    %c0_66 = arith.constant 0 : index
    %74 = vector.load %arg3[%c0_65, %c0_66] : memref<8x1xf32, #tpu.memory_space<vmem>>, vector<8x1xf32>
    %75 = vector.broadcast %74 : vector<8x1xf32> to vector<8x256xf32>
    %76 = arith.addf %73, %75 : vector<8x256xf32>
    %c1_67 = arith.constant 1 : index
    %c0_68 = arith.constant 0 : index
    %c0_69 = arith.constant 0 : index
    %77 = vector.load %arg4[%c1_67, %c0_68, %c0_69] : memref<2x8x256xf32, #tpu.memory_space<vmem>>, vector<1x8x256xf32>
    %78 = vector.shape_cast %77 : vector<1x8x256xf32> to vector<8x256xf32>
    %79 = vector.shape_cast %76 : vector<8x256xf32> to vector<1x8x256xf32>
    tpu.vector_store %arg4[%c1_67, %c0_68, %c0_69], %79 {strides = array<i32>} : memref<2x8x256xf32, #tpu.memory_space<vmem>>, vector<1x8x256xf32>,
    return
  }
  func.func @transform_0(%arg0: i32) -> (i32, i32, i32) {
    %c0_i32 = arith.constant 0 : i32
    %c0_i32_0 = arith.constant 0 : i32
    %c0_i32_1 = arith.constant 0 : i32
    %c0_i32_2 = arith.constant 0 : i32
    return %c0_i32, %c0_i32_0, %c0_i32_1 : i32, i32, i32
  }
  func.func @transform_1(%arg0: i32) -> (i32, i32) {
    %c0_i32 = arith.constant 0 : i32
    %c0_i32_0 = arith.constant 0 : i32
    %c0_i32_1 = arith.constant 0 : i32
    return %c0_i32, %c0_i32_0 : i32, i32
  }
  func.func @transform_2(%arg0: i32) -> (i32, i32) {
    %c0_i32 = arith.constant 0 : i32
    %c0_i32_0 = arith.constant 0 : i32
    %c0_i32_1 = arith.constant 0 : i32
    return %c0_i32, %c0_i32_0 : i32, i32
  }
  func.func @transform_3(%arg0: i32) -> (i32, i32, i32) {
    %c0_i32 = arith.constant 0 : i32
    %c0_i32_0 = arith.constant 0 : i32
    %c0_i32_1 = arith.constant 0 : i32
    %c0_i32_2 = arith.constant 0 : i32
    return %c0_i32, %c0_i32_0, %c0_i32_1 : i32, i32, i32
  }
}

</mosaic_0001>

<llo_original>
// kernel: conv2d_pallas.1
$region0: #{conv2d_pallas.1}
  #allocation0 [shape = 'u32[]', space=smem, size = 0x4, offset = 0x4, fixed_abs, tag = 'smem constant byte address 0x4 - core index']
  #allocation1 [shape = 'u32[72,128]{1,0:T(1,128)}', space=vmem, size = 0x9000, scoped, tag = 'internal scratch']
  #allocation2 [shape = 'f32[8,384]{1,0:T(8,128)}', space=vmem, size = 0x3000, scoped, tag = 'scratch operand']
  #allocation3 [shape = 'f32[72,256]{1,0:T(8,128)}', space=vmem, size = 0x12000, scoped, tag = 'scratch operand']
  %s0 = inlined_call_operand.vmem [shape: f32[2,3,256], index: 0, kind: input, shape index: {}]
  %s1 = inlined_call_operand.vmem [shape: f32[8,72], index: 1, kind: input, shape index: {}]
  %s2 = inlined_call_operand.vmem [shape: f32[8,1], index: 2, kind: input, shape index: {}]
  %s3 = inlined_call_operand.vmem [shape: f32[2,8,256], index: 3, kind: output, shape index: {}]
  %s4 = sld [smem:[#allocation0]]
  $region22: #{conv2d_pallas.1} parent=0
    _
  %s6 = ssub.s32 1, %s4
  %s7 = scalar_select 0, %s6, %s4
  // Predicated region
  $region2: #{conv2d_pallas.1} parent=0 // pred_check
    _
  $region3: #{conv2d_pallas.1} parent=0 // pred_check_branch
    %9 = sbr.rel (0) target = $region5
  $region4: #{conv2d_pallas.1} parent=0 // pred_region
    _
  $region5: #{conv2d_pallas.1} parent=0 // pred_fallthru
    _
  // Predicated region
  $region6: #{conv2d_pallas.1} parent=0 // pred_check
    _
  $region7: #{conv2d_pallas.1} parent=0 // pred_check_branch
    %11 = sbr.rel (0) target = $region9
  $region8: #{conv2d_pallas.1} parent=0 // pred_region
    _
  $region9: #{conv2d_pallas.1} parent=0 // pred_fallthru
    _
  // Predicated region
  $region10: #{conv2d_pallas.1} parent=0 // pred_check
    _
  $region11: #{conv2d_pallas.1} parent=0 // pred_check_branch
    %13 = sbr.rel (0) target = $region13
  $region12: #{conv2d_pallas.1} parent=0 // pred_region
    _
  $region13: #{conv2d_pallas.1} parent=0 // pred_fallthru
    _
  %14 = vst [vmem:[#allocation2] sm:$0xff] 0.0
  %15 = vst [vmem:[#allocation2 + $0x8] sm:$0xff] 0.0
  %16 = vst [vmem:[#allocation2 + $0x10] sm:$0xff] 0.0
  %v17 = vld [vmem:[%s0] sm:$0x77]
  %19 = vst [vmem:[#allocation1] ss:$2 sm:$0xff] %v17
  %v20 = vld.sshfl [vmem:[#allocation1] sm:$0xff pattern:$0x75316420]
  %v21 = vld.sshfl [vmem:[#allocation1 + $0x8] sm:$0xff pattern:$0x75316420]
  %24 = vst [vmem:[#allocation2] sm:$0x7] %v20
  %25 = vst [vmem:[#allocation2 + $0x8] sm:$0x7] %v21
  %v26 = vld [vmem:[#allocation2] sm:$0xff]
  %v27 = vld [vmem:[#allocation2 + $0x8] sm:$0xff]
  %v28 = vld [vmem:[#allocation2 + $0x10] sm:$0xff]
  %29 = vst [vmem:[#allocation3] sm:$0xff] %v26
  %30 = vst [vmem:[#allocation3 + $0x8] sm:$0xff] %v27
  %31 = vrot.lane.b32.xlu0 %v26, 127
  %v32 = vpop.permute.xlu0 %31
  %33 = vrot.lane.b32.xlu0 %v27, 127
  %v34 = vpop.permute.xlu0 %33
  %35 = vrot.lane.b32.xlu0 %v28, 127
  %v36 = vpop.permute.xlu0 %35
  %v37 = vlaneseq
  %v38 = vand.u32 %v37, 127
  %vm39 = vcmp.lt.s32.totalorder %v38, 127
  %v40 = vsel %vm39, %v34, %v36
  %v41 = vsel %vm39, %v32, %v34
  %42 = vst [vmem:[#allocation3 + $0x10] sm:$0xff] %v41
  %43 = vst [vmem:[#allocation3 + $0x18] sm:$0xff] %v40
  %44 = vrot.lane.b32.xlu0 %v26, 126
  %v45 = vpop.permute.xlu0 %44
  %46 = vrot.lane.b32.xlu0 %v27, 126
  %v47 = vpop.permute.xlu0 %46
  %48 = vrot.lane.b32.xlu0 %v28, 126
  %v49 = vpop.permute.xlu0 %48
  %vm50 = vcmp.lt.s32.totalorder %v38, 126
  %v51 = vsel %vm50, %v47, %v49
  %v52 = vsel %vm50, %v45, %v47
  %53 = vst [vmem:[#allocation3 + $0x20] sm:$0xff] %v52
  %54 = vst [vmem:[#allocation3 + $0x28] sm:$0xff] %v51
  %55 = vrot.lane.b32.xlu0 %v26, 112
  %v56 = vpop.permute.xlu0 %55
  %57 = vrot.lane.b32.xlu0 %v27, 112
  %v58 = vpop.permute.xlu0 %57
  %59 = vrot.lane.b32.xlu0 %v28, 112
  %v60 = vpop.permute.xlu0 %59
  %vm61 = vcmp.lt.s32.totalorder %v38, 112
  %v62 = vsel %vm61, %v58, %v60
  %v63 = vsel %vm61, %v56, %v58
  %64 = vst [vmem:[#allocation3 + $0x30] sm:$0xff] %v63
  %65 = vst [vmem:[#allocation3 + $0x38] sm:$0xff] %v62
  %66 = vrot.lane.b32.xlu0 %v26, 111
  %v67 = vpop.permute.xlu0 %66
  %68 = vrot.lane.b32.xlu0 %v27, 111
  %v69 = vpop.permute.xlu0 %68
  %70 = vrot.lane.b32.xlu0 %v28, 111
  %v71 = vpop.permute.xlu0 %70
  %vm72 = vcmp.lt.s32.totalorder %v38, 111
  %v73 = vsel %vm72, %v69, %v71
  %v74 = vsel %vm72, %v67, %v69
  %75 = vst [vmem:[#allocation3 + $0x40] sm:$0xff] %v74
  %76 = vst [vmem:[#allocation3 + $0x48] sm:$0xff] %v73
  %77 = vrot.lane.b32.xlu0 %v26, 110
  %v78 = vpop.permute.xlu0 %77
  %79 = vrot.lane.b32.xlu0 %v27, 110
  %v80 = vpop.permute.xlu0 %79
  %81 = vrot.lane.b32.xlu0 %v28, 110
  %v82 = vpop.permute.xlu0 %81
  %vm83 = vcmp.lt.s32.totalorder %v38, 110
  %v84 = vsel %vm83, %v80, %v82
  %v85 = vsel %vm83, %v78, %v80
  %86 = vst [vmem:[#allocation3 + $0x50] sm:$0xff] %v85
  %87 = vst [vmem:[#allocation3 + $0x58] sm:$0xff] %v84
  %88 = vrot.lane.b32.xlu0 %v26, 96
  %v89 = vpop.permute.xlu0 %88
  %90 = vrot.lane.b32.xlu0 %v27, 96
  %v91 = vpop.permute.xlu0 %90
  %92 = vrot.lane.b32.xlu0 %v28, 96
  %v93 = vpop.permute.xlu0 %92
  %vm94 = vcmp.lt.s32.totalorder %v38, 96
  %v95 = vsel %vm94, %v91, %v93
  %v96 = vsel %vm94, %v89, %v91
  %97 = vst [vmem:[#allocation3 + $0x60] sm:$0xff] %v96
  %98 = vst [vmem:[#allocation3 + $0x68] sm:$0xff] %v95
  %99 = vrot.lane.b32.xlu0 %v26, 95
  %v100 = vpop.permute.xlu0 %99
  %101 = vrot.lane.b32.xlu0 %v27, 95
  %v102 = vpop.permute.xlu0 %101
  %103 = vrot.lane.b32.xlu0 %v28, 95
  %v104 = vpop.permute.xlu0 %103
  %vm105 = vcmp.lt.s32.totalorder %v38, 95
  %v106 = vsel %vm105, %v102, %v104
  %v107 = vsel %vm105, %v100, %v102
  %108 = vst [vmem:[#allocation3 + $0x70] sm:$0xff] %v107
  %109 = vst [vmem:[#allocation3 + $0x78] sm:$0xff] %v106
  %110 = vrot.lane.b32.xlu0 %v26, 94
  %v111 = vpop.permute.xlu0 %110
  %112 = vrot.lane.b32.xlu0 %v27, 94
  %v113 = vpop.permute.xlu0 %112
  %114 = vrot.lane.b32.xlu0 %v28, 94
  %v115 = vpop.permute.xlu0 %114
  %vm116 = vcmp.lt.s32.totalorder %v38, 94
  %v117 = vsel %vm116, %v113, %v115
  %v118 = vsel %vm116, %v111, %v113
  %119 = vst [vmem:[#allocation3 + $0x80] sm:$0xff] %v118
  %120 = vst [vmem:[#allocation3 + $0x88] sm:$0xff] %v117
  %v121 = vld [vmem:[%s1] sm:$0xff]
  %v122 = vld [vmem:[#allocation3] sm:$0xff]
  %v123 = vld [vmem:[#allocation3 + $0x8] sm:$0xff]
  %v124 = vld [vmem:[#allocation3 + $0x10] sm:$0xff]
  %v125 = vld [vmem:[#allocation3 + $0x18] sm:$0xff]
  %v126 = vld [vmem:[#allocation3 + $0x20] sm:$0xff]
  %v127 = vld [vmem:[#allocation3 + $0x28] sm:$0xff]
  %v128 = vld [vmem:[#allocation3 + $0x30] sm:$0xff]
  %v129 = vld [vmem:[#allocation3 + $0x38] sm:$0xff]
  %v130 = vld [vmem:[#allocation3 + $0x40] sm:$0xff]
  %v131 = vld [vmem:[#allocation3 + $0x48] sm:$0xff]
  %v132 = vld [vmem:[#allocation3 + $0x50] sm:$0xff]
  %v133 = vld [vmem:[#allocation3 + $0x58] sm:$0xff]
  %v134 = vld [vmem:[#allocation3 + $0x60] sm:$0xff]
  %v135 = vld [vmem:[#allocation3 + $0x68] sm:$0xff]
  %v136 = vld [vmem:[#allocation3 + $0x70] sm:$0xff]
  %v137 = vld [vmem:[#allocation3 + $0x78] sm:$0xff]
  %v138 = vld [vmem:[#allocation3 + $0x80] sm:$0xff]
  %v139 = vld [vmem:[#allocation3 + $0x88] sm:$0xff]
  %v140 = vld [vmem:[%s2] sm:$0xff]
  %142 = vset.pattern.permute.xlu0 0
  %143 = vperm.xlu0 %142, %v140
  %v144 = vpop.permute.xlu0 %143
  %vm146 = vcmask 588800
  %v148 = vsel %vm146, %v121, 0
  %150 = vmatpush.msra.mxu0 0.0
  %151 = vmatpush.msra.mxu0 0.0
  %152 = vmatpush.msra.mxu0 0.0
  %153 = vmatpush.msra.mxu0 0.0
  %154 = vmatpush.msra.mxu0 0.0
  %155 = vmatpush.msra.mxu0 0.0
  %156 = vmatpush.msra.mxu0 0.0
  %157 = vmatpush.msra.mxu0 %v138
  %158 = vmatpush.msra.mxu0 %v136
  %159 = vmatpush.msra.mxu0 %v134
  %160 = vmatpush.msra.mxu0 %v132
  %161 = vmatpush.msra.mxu0 %v130
  %162 = vmatpush.msra.mxu0 %v128
  %163 = vmatpush.msra.mxu0 %v126
  %164 = vmatpush.msra.mxu0 %v124
  %165 = vmatpush.msra.mxu0 %v122
  %166 = vmatmul.f32.gmra.mxu0 %v148
  %v167 = vpop.f32.mrf.mxu0
  %v168 = vadd.f32 %v144, %v167
  %169 = vdwg.mxu0
  %170 = vmatpush.msra.mxu0 0.0
  %171 = vmatpush.msra.mxu0 0.0
  %172 = vmatpush.msra.mxu0 0.0
  %173 = vmatpush.msra.mxu0 0.0
  %174 = vmatpush.msra.mxu0 0.0
  %175 = vmatpush.msra.mxu0 0.0
  %176 = vmatpush.msra.mxu0 0.0
  %177 = vmatpush.msra.mxu0 %v139
  %178 = vmatpush.msra.mxu0 %v137
  %179 = vmatpush.msra.mxu0 %v135
  %180 = vmatpush.msra.mxu0 %v133
  %181 = vmatpush.msra.mxu0 %v131
  %182 = vmatpush.msra.mxu0 %v129
  %183 = vmatpush.msra.mxu0 %v127
  %184 = vmatpush.msra.mxu0 %v125
  %185 = vmatpush.msra.mxu0 %v123
  %186 = vmatmul.f32.gmra.mxu0 %v148
  %v187 = vpop.f32.mrf.mxu0
  %v188 = vadd.f32 %v144, %v187
  %189 = vdwg.mxu0
  %190 = vst [vmem:[%s3] sm:$0xff] %v168
  %191 = vst [vmem:[%s3 + $0x8] sm:$0xff] %v188
  %s192 = scalar_lea.vmem %s0, 8
  %v193 = vld [vmem:[%s192] sm:$0x77]
  %195 = vst [vmem:[#allocation1] ss:$2 sm:$0xff] %v193
  %v196 = vld.sshfl [vmem:[#allocation1] sm:$0xff pattern:$0x75316420]
  %v197 = vld.sshfl [vmem:[#allocation1 + $0x8] sm:$0xff pattern:$0x75316420]
  %200 = vst [vmem:[#allocation2] sm:$0x7] %v196
  %201 = vst [vmem:[#allocation2 + $0x8] sm:$0x7] %v197
  %v202 = vld [vmem:[#allocation2] sm:$0xff]
  %v203 = vld [vmem:[#allocation2 + $0x8] sm:$0xff]
  %v204 = vld [vmem:[#allocation2 + $0x10] sm:$0xff]
  %205 = vst [vmem:[#allocation3] sm:$0xff] %v202
  %206 = vst [vmem:[#allocation3 + $0x8] sm:$0xff] %v203
  %207 = vrot.lane.b32.xlu0 %v202, 127
  %v208 = vpop.permute.xlu0 %207
  %209 = vrot.lane.b32.xlu0 %v203, 127
  %v210 = vpop.permute.xlu0 %209
  %211 = vrot.lane.b32.xlu0 %v204, 127
  %v212 = vpop.permute.xlu0 %211
  %v213 = vsel %vm39, %v210, %v212
  %v214 = vsel %vm39, %v208, %v210
  %215 = vst [vmem:[#allocation3 + $0x10] sm:$0xff] %v214
  %216 = vst [vmem:[#allocation3 + $0x18] sm:$0xff] %v213
  %217 = vrot.lane.b32.xlu0 %v202, 126
  %v218 = vpop.permute.xlu0 %217
  %219 = vrot.lane.b32.xlu0 %v203, 126
  %v220 = vpop.permute.xlu0 %219
  %221 = vrot.lane.b32.xlu0 %v204, 126
  %v222 = vpop.permute.xlu0 %221
  %v223 = vsel %vm50, %v220, %v222
  %v224 = vsel %vm50, %v218, %v220
  %225 = vst [vmem:[#allocation3 + $0x20] sm:$0xff] %v224
  %226 = vst [vmem:[#allocation3 + $0x28] sm:$0xff] %v223
  %227 = vrot.lane.b32.xlu0 %v202, 112
  %v228 = vpop.permute.xlu0 %227
  %229 = vrot.lane.b32.xlu0 %v203, 112
  %v230 = vpop.permute.xlu0 %229
  %231 = vrot.lane.b32.xlu0 %v204, 112
  %v232 = vpop.permute.xlu0 %231
  %v233 = vsel %vm61, %v230, %v232
  %v234 = vsel %vm61, %v228, %v230
  %235 = vst [vmem:[#allocation3 + $0x30] sm:$0xff] %v234
  %236 = vst [vmem:[#allocation3 + $0x38] sm:$0xff] %v233
  %237 = vrot.lane.b32.xlu0 %v202, 111
  %v238 = vpop.permute.xlu0 %237
  %239 = vrot.lane.b32.xlu0 %v203, 111
  %v240 = vpop.permute.xlu0 %239
  %241 = vrot.lane.b32.xlu0 %v204, 111
  %v242 = vpop.permute.xlu0 %241
  %v243 = vsel %vm72, %v240, %v242
  %v244 = vsel %vm72, %v238, %v240
  %245 = vst [vmem:[#allocation3 + $0x40] sm:$0xff] %v244
  %246 = vst [vmem:[#allocation3 + $0x48] sm:$0xff] %v243
  %247 = vrot.lane.b32.xlu0 %v202, 110
  %v248 = vpop.permute.xlu0 %247
  %249 = vrot.lane.b32.xlu0 %v203, 110
  %v250 = vpop.permute.xlu0 %249
  %251 = vrot.lane.b32.xlu0 %v204, 110
  %v252 = vpop.permute.xlu0 %251
  %v253 = vsel %vm83, %v250, %v252
  %v254 = vsel %vm83, %v248, %v250
  %255 = vst [vmem:[#allocation3 + $0x50] sm:$0xff] %v254
  %256 = vst [vmem:[#allocation3 + $0x58] sm:$0xff] %v253
  %257 = vrot.lane.b32.xlu0 %v202, 96
  %v258 = vpop.permute.xlu0 %257
  %259 = vrot.lane.b32.xlu0 %v203, 96
  %v260 = vpop.permute.xlu0 %259
  %261 = vrot.lane.b32.xlu0 %v204, 96
  %v262 = vpop.permute.xlu0 %261
  %v263 = vsel %vm94, %v260, %v262
  %v264 = vsel %vm94, %v258, %v260
  %265 = vst [vmem:[#allocation3 + $0x60] sm:$0xff] %v264
  %266 = vst [vmem:[#allocation3 + $0x68] sm:$0xff] %v263
  %267 = vrot.lane.b32.xlu0 %v202, 95
  %v268 = vpop.permute.xlu0 %267
  %269 = vrot.lane.b32.xlu0 %v203, 95
  %v270 = vpop.permute.xlu0 %269
  %271 = vrot.lane.b32.xlu0 %v204, 95
  %v272 = vpop.permute.xlu0 %271
  %v273 = vsel %vm105, %v270, %v272
  %v274 = vsel %vm105, %v268, %v270
  %275 = vst [vmem:[#allocation3 + $0x70] sm:$0xff] %v274
  %276 = vst [vmem:[#allocation3 + $0x78] sm:$0xff] %v273
  %277 = vrot.lane.b32.xlu0 %v202, 94
  %v278 = vpop.permute.xlu0 %277
  %279 = vrot.lane.b32.xlu0 %v203, 94
  %v280 = vpop.permute.xlu0 %279
  %281 = vrot.lane.b32.xlu0 %v204, 94
  %v282 = vpop.permute.xlu0 %281
  %v283 = vsel %vm116, %v280, %v282
  %v284 = vsel %vm116, %v278, %v280
  %285 = vst [vmem:[#allocation3 + $0x80] sm:$0xff] %v284
  %286 = vst [vmem:[#allocation3 + $0x88] sm:$0xff] %v283
  %v287 = vld [vmem:[%s1] sm:$0xff]
  %v288 = vld [vmem:[#allocation3] sm:$0xff]
  %v289 = vld [vmem:[#allocation3 + $0x8] sm:$0xff]
  %v290 = vld [vmem:[#allocation3 + $0x10] sm:$0xff]
  %v291 = vld [vmem:[#allocation3 + $0x18] sm:$0xff]
  %v292 = vld [vmem:[#allocation3 + $0x20] sm:$0xff]
  %v293 = vld [vmem:[#allocation3 + $0x28] sm:$0xff]
  %v294 = vld [vmem:[#allocation3 + $0x30] sm:$0xff]
  %v295 = vld [vmem:[#allocation3 + $0x38] sm:$0xff]
  %v296 = vld [vmem:[#allocation3 + $0x40] sm:$0xff]
  %v297 = vld [vmem:[#allocation3 + $0x48] sm:$0xff]
  %v298 = vld [vmem:[#allocation3 + $0x50] sm:$0xff]
  %v299 = vld [vmem:[#allocation3 + $0x58] sm:$0xff]
  %v300 = vld [vmem:[#allocation3 + $0x60] sm:$0xff]
  %v301 = vld [vmem:[#allocation3 + $0x68] sm:$0xff]
  %v302 = vld [vmem:[#allocation3 + $0x70] sm:$0xff]
  %v303 = vld [vmem:[#allocation3 + $0x78] sm:$0xff]
  %v304 = vld [vmem:[#allocation3 + $0x80] sm:$0xff]
  %v305 = vld [vmem:[#allocation3 + $0x88] sm:$0xff]
  %v306 = vld [vmem:[%s2] sm:$0xff]
  %308 = vset.pattern.permute.xlu0 0
  %309 = vperm.xlu0 %308, %v306
  %v310 = vpop.permute.xlu0 %309
  %v313 = vsel %vm146, %v287, 0
  %315 = vmatpush.msra.mxu0 0.0
  %316 = vmatpush.msra.mxu0 0.0
  %317 = vmatpush.msra.mxu0 0.0
  %318 = vmatpush.msra.mxu0 0.0
  %319 = vmatpush.msra.mxu0 0.0
  %320 = vmatpush.msra.mxu0 0.0
  %321 = vmatpush.msra.mxu0 0.0
  %322 = vmatpush.msra.mxu0 %v304
  %323 = vmatpush.msra.mxu0 %v302
  %324 = vmatpush.msra.mxu0 %v300
  %325 = vmatpush.msra.mxu0 %v298
  %326 = vmatpush.msra.mxu0 %v296
  %327 = vmatpush.msra.mxu0 %v294
  %328 = vmatpush.msra.mxu0 %v292
  %329 = vmatpush.msra.mxu0 %v290
  %330 = vmatpush.msra.mxu0 %v288
  %331 = vmatmul.f32.gmra.mxu0 %v313
  %v332 = vpop.f32.mrf.mxu0
  %v333 = vadd.f32 %v310, %v332
  %334 = vdwg.mxu0
  %335 = vmatpush.msra.mxu0 0.0
  %336 = vmatpush.msra.mxu0 0.0
  %337 = vmatpush.msra.mxu0 0.0
  %338 = vmatpush.msra.mxu0 0.0
  %339 = vmatpush.msra.mxu0 0.0
  %340 = vmatpush.msra.mxu0 0.0
  %341 = vmatpush.msra.mxu0 0.0
  %342 = vmatpush.msra.mxu0 %v305
  %343 = vmatpush.msra.mxu0 %v303
  %344 = vmatpush.msra.mxu0 %v301
  %345 = vmatpush.msra.mxu0 %v299
  %346 = vmatpush.msra.mxu0 %v297
  %347 = vmatpush.msra.mxu0 %v295
  %348 = vmatpush.msra.mxu0 %v293
  %349 = vmatpush.msra.mxu0 %v291
  %350 = vmatpush.msra.mxu0 %v289
  %351 = vmatmul.f32.gmra.mxu0 %v313
  %v352 = vpop.f32.mrf.mxu0
  %v353 = vadd.f32 %v310, %v352
  %354 = vdwg.mxu0
  %s355 = scalar_lea.vmem %s3, 16
  %356 = vst [vmem:[%s355] sm:$0xff] %v333
  %357 = vst [vmem:[%s355 + $0x8] sm:$0xff] %v353
  // Predicated region
  $region14: #{conv2d_pallas.1} parent=0 // pred_check
    _
  $region15: #{conv2d_pallas.1} parent=0 // pred_check_branch
    %359 = sbr.rel (0) target = $region17
  $region16: #{conv2d_pallas.1} parent=0 // pred_region
    _
  $region17: #{conv2d_pallas.1} parent=0 // pred_fallthru
    _
  // Predicated region
  $region18: #{conv2d_pallas.1} parent=0 // pred_check
    _
  $region19: #{conv2d_pallas.1} parent=0 // pred_check_branch
    %361 = sbr.rel (0) target = $region21
  $region20: #{conv2d_pallas.1} parent=0 // pred_region
    _
  $region21: #{conv2d_pallas.1} parent=0 // pred_fallthru
    _

</llo_original>
